<compile_context>
chip_gen: v7x
topology: tpu7x:2x2x1
jax: 0.10.0
libtpu: 0.0.40
codegen_flags: <defaults>
</compile_context>

<pallas_src>
import jax
import jax.numpy as jnp
from jax.experimental import pallas as pl
from jax.experimental.pallas import tpu as pltpu

IMG_FEATS = 28 * 28      # 784
HIDDEN = 256
N_LATENT = 32
LEAKY_SLOPE = 0.01       # torch.nn.functional.leaky_relu default


def _leaky_relu(x):
    return jnp.where(x > 0, x, LEAKY_SLOPE * x)


def _round_up(x, m):
    return (x + m - 1) // m * m


def _num_tensorcores():
    """TensorCores per chip: 2 on v7x, 1 on v5e/v6e. Best effort."""
    try:
        kind = jax.devices()[0].device_kind.lower()
    except Exception:
        return 1
    return 2 if "v7" in kind else 1


def _pick_batch_tile(B, cap, min_steps):
    """Choose (tb, B_pad).

    Prefers a tile that divides B exactly (no jnp.pad copy of x) and yields at
    least `min_steps` grid steps (one per TensorCore). Falls back to the
    smallest padding that still gives `min_steps` steps.
    """
    cap = max(8, (int(cap) // 8) * 8)
    # 1) exact-divisor search: largest multiple-of-8 divisor <= cap, not so
    #    small that per-grid-step overhead dominates.
    if B % 8 == 0:
        floor = min(B, 128)
        tb = min(cap, B)
        while tb >= floor:
            if B % tb == 0 and B // tb >= min_steps:
                return tb, B
            tb -= 8
    # 2) fall back: split B across >= min_steps tiles and pad the remainder.
    tb = min(cap, max(8, _round_up(-(-B // min_steps), 8)))
    return tb, _round_up(B, tb)


def _vmem_limit_bytes(tb, x_itemsize, n_latent):
    """Scoped-VMEM request derived from the actual tile footprint."""
    lane = lambda d: _round_up(d, 128)
    x_tile = tb * lane(IMG_FEATS) * x_itemsize
    o_tile = tb * lane(n_latent) * 4
    weights = (IMG_FEATS * lane(HIDDEN) * 2 + HIDDEN * lane(n_latent) * 2
               + 8 * lane(HIDDEN) * 4 + 8 * lane(n_latent) * 4)
    temps = tb * lane(HIDDEN) * 4 * 2 + tb * lane(n_latent) * 4      # h1, z
    total = 2 * (x_tile + o_tile + weights) + temps                  # 2x: double-buffering
    return min(int(total * 1.5) + (4 << 20), 40 << 20)


def encoder_kernel(x_ref, w1_ref, b1_ref, w2_ref, b2_ref, o_ref):
    # x:  (tb, 784)       native dtype (f32); cast to bf16 on the VPU here so
    #                     the wrapper never runs a separate HBM convert pass.
    # w1: (784, 256)      bf16     b1: (1, 256)       f32
    # w2: (256, n_lat)    bf16     b2: (1, n_lat)     f32
    # o:  (tb, n_lat)     f32
    x = x_ref[...].astype(jnp.bfloat16)
    h1 = jnp.dot(x, w1_ref[...], preferred_element_type=jnp.float32)
    h1 = _leaky_relu(h1 + b1_ref[...])                               # f32 VPU
    z = jnp.dot(h1.astype(jnp.bfloat16), w2_ref[...],
                preferred_element_type=jnp.float32)
    o_ref[...] = _leaky_relu(z + b2_ref[...]).astype(o_ref.dtype)    # f32 VPU


def encoder_dense_forward(x, params, *, tile_b=512, num_cores=None):
    """x: (B, 784) or (B, 1, 28, 28). Returns (B, n_latent) float32."""
    w1, b1, w2, b2 = params
    n_latent = w2.shape[1]

    x2 = x.reshape(-1, IMG_FEATS)
    B = x2.shape[0]

    # Weights are tiny and grid-constant: cast them to bf16 once in the
    # wrapper. The activation x stays in its native dtype (cast in-kernel).
    w1b = w1 if w1.dtype == jnp.bfloat16 else w1.astype(jnp.bfloat16)
    w2b = w2 if w2.dtype == jnp.bfloat16 else w2.astype(jnp.bfloat16)
    b1f = b1.reshape(1, HIDDEN).astype(jnp.float32)
    b2f = b2.reshape(1, n_latent).astype(jnp.float32)

    if num_cores is None:
        num_cores = _num_tensorcores()
    tb, B_pad = _pick_batch_tile(B, tile_b, max(1, int(num_cores)))
    if B_pad != B:
        # TODO(synk): handle the ragged last tile in-kernel (mask rows >= B)
        # to avoid this extra HBM pass for awkward batch sizes.
        x2 = jnp.pad(x2, ((0, B_pad - B), (0, 0)))

    def rep(shape):
        # grid-constant (replicated) block
        return pl.BlockSpec(shape, lambda i: (0,) * len(shape))

    out = pl.pallas_call(
        encoder_kernel,
        out_shape=jax.ShapeDtypeStruct((B_pad, n_latent), jnp.float32),
        grid_spec=pltpu.PrefetchScalarGridSpec(
            num_scalar_prefetch=0,
            grid=(B_pad // tb,),
            in_specs=[
                pl.BlockSpec((tb, IMG_FEATS), lambda i: (i, 0)),   # x tile
                rep((IMG_FEATS, HIDDEN)), rep((1, HIDDEN)),        # dense_1
                rep((HIDDEN, n_latent)), rep((1, n_latent)),       # dense_2
            ],
            out_specs=pl.BlockSpec((tb, n_latent), lambda i: (i, 0)),
        ),
        compiler_params=pltpu.CompilerParams(
            dimension_semantics=("parallel",),
            vmem_limit_bytes=_vmem_limit_bytes(tb, x2.dtype.itemsize, n_latent),
        ),
    )(x2, w1b, b1f, w2b, b2f)

    return out if B_pad == B else out[:B]


def init_params(key, n_latent=N_LATENT):
    """Mimics nn.Linear's U(-1/sqrt(fan_in), 1/sqrt(fan_in)) init.
    Weights stored as (in, out); biases as (1, out)."""
    def linear(key, fan_in, fan_out):
        kw, kb = jax.random.split(key)
        bound = 1.0 / jnp.sqrt(jnp.float32(fan_in))
        w = jax.random.uniform(kw, (fan_in, fan_out), jnp.float32, -bound, bound)
        b = jax.random.uniform(kb, (1, fan_out), jnp.float32, -bound, bound)
        return w, b

    k1, k2 = jax.random.split(key)
    w1, b1 = linear(k1, IMG_FEATS, HIDDEN)     # dense_1: 784 -> 256
    w2, b2 = linear(k2, HIDDEN, n_latent)      # dense_2: 256 -> n_latent
    return (w1, b1, w2, b2)


def reference_forward(x, params):
    """Pure-JAX reference with the same bf16-operand / f32-accumulate recipe."""
    w1, b1, w2, b2 = params
    x2 = x.reshape(-1, IMG_FEATS).astype(jnp.bfloat16)
    h1 = jnp.dot(x2, w1.astype(jnp.bfloat16),
                 preferred_element_type=jnp.float32) + b1.reshape(1, -1)
    h1 = _leaky_relu(h1)
    z = jnp.dot(h1.astype(jnp.bfloat16), w2.astype(jnp.bfloat16),
                preferred_element_type=jnp.float32) + b2.reshape(1, -1)
    return _leaky_relu(z)


if __name__ == "__main__":
    key = jax.random.PRNGKey(0)
    kx1, kx2, kp = jax.random.split(key, 3)
    params = init_params(kp, N_LATENT)

    # (B, 1, 28, 28) NCHW-style input; tile-aligned batch (no pad pass)
    x_img = jax.random.normal(kx1, (32, 1, 28, 28), jnp.float32)
    out1 = jax.block_until_ready(encoder_dense_forward(x_img, params))
    ref1 = reference_forward(x_img, params)
    assert out1.shape == (32, N_LATENT)
    assert jnp.allclose(out1, ref1, atol=1e-2, rtol=1e-2), "mismatch vs reference (img)"

    # already-flattened input with a batch that is NOT 8-aligned (pad fallback)
    x_flat = jax.random.normal(kx2, (20, IMG_FEATS), jnp.float32)
    out2 = jax.block_until_ready(encoder_dense_forward(x_flat, params))
    ref2 = reference_forward(x_flat, params)
    assert out2.shape == (20, N_LATENT)
    assert jnp.allclose(out2, ref2, atol=1e-2, rtol=1e-2), "mismatch vs reference (flat)"

    print("KERNEL_OK")
</pallas_src>

<mosaic_0001>
module attributes {stable_mosaic.version = 11 : i64} {
  func.func @encoder_kernel(%arg0: i32, %arg1: memref<32x784xf32, #tpu.memory_space<vmem>>, %arg2: memref<784x256xbf16, #tpu.memory_space<vmem>>, %arg3: memref<1x256xf32, #tpu.memory_space<vmem>>, %arg4: memref<256x32xbf16, #tpu.memory_space<vmem>>, %arg5: memref<1x32xf32, #tpu.memory_space<vmem>>, %arg6: memref<32x32xf32, #tpu.memory_space<vmem>>) attributes {dimension_semantics = [#tpu.dimension_semantics<parallel>], iteration_bounds = array<i64: 1>, scalar_prefetch = 0 : i64, scratch_operands = 0 : i64, tpu.core_type = #tpu.core_type<tc>, window_params = [{transform_indices = @transform_0, window_bounds = array<i64: 32, 784>}, {pipeline_mode = #tpu.pipeline_mode<synchronous>, transform_indices = @transform_1, window_bounds = array<i64: 784, 256>}, {pipeline_mode = #tpu.pipeline_mode<synchronous>, transform_indices = @transform_2, window_bounds = array<i64: 1, 256>}, {pipeline_mode = #tpu.pipeline_mode<synchronous>, transform_indices = @transform_3, window_bounds = array<i64: 256, 32>}, {pipeline_mode = #tpu.pipeline_mode<synchronous>, transform_indices = @transform_4, window_bounds = array<i64: 1, 32>}, {transform_indices = @transform_5, window_bounds = array<i64: 32, 32>}]} {
    %c0 = arith.constant 0 : index
    %c0_0 = arith.constant 0 : index
    %0 = vector.load %arg1[%c0, %c0_0] : memref<32x784xf32, #tpu.memory_space<vmem>>, vector<32x784xf32>
    %1 = arith.truncf %0 : vector<32x784xf32> to vector<32x784xbf16>
    %c0_1 = arith.constant 0 : index
    %c0_2 = arith.constant 0 : index
    %2 = vector.load %arg2[%c0_1, %c0_2] : memref<784x256xbf16, #tpu.memory_space<vmem>>, vector<784x256xbf16>
    %cst = arith.constant dense<0.000000e+00> : vector<32x256xf32>
    %3 = tpu.matmul %1, %2, %cst {dimension_numbers = #tpu.dot_dimension_numbers<[1], [0], [0], [1], [0, 0, 1, 1], [], []>} : vector<32x784xbf16>, vector<784x256xbf16>, vector<32x256xf32> -> vector<32x256xf32>
    %c0_3 = arith.constant 0 : index
    %c0_4 = arith.constant 0 : index
    %4 = vector.load %arg3[%c0_3, %c0_4] : memref<1x256xf32, #tpu.memory_space<vmem>>, vector<1x256xf32>
    %5 = vector.broadcast %4 : vector<1x256xf32> to vector<32x256xf32>
    %6 = arith.addf %3, %5 : vector<32x256xf32>
    %cst_5 = arith.constant 0.000000e+00 : f32
    %7 = vector.broadcast %cst_5 : f32 to vector<32x256xf32>
    %8 = arith.cmpf ogt, %6, %7 : vector<32x256xf32>
    %cst_6 = arith.constant 0.00999999977 : f32
    %9 = vector.broadcast %cst_6 : f32 to vector<32x256xf32>
    %10 = arith.mulf %9, %6 : vector<32x256xf32>
    %11 = arith.select %8, %6, %10 : vector<32x256xi1>, vector<32x256xf32>
    %12 = arith.truncf %11 : vector<32x256xf32> to vector<32x256xbf16>
    %c0_7 = arith.constant 0 : index
    %c0_8 = arith.constant 0 : index
    %13 = vector.load %arg4[%c0_7, %c0_8] : memref<256x32xbf16, #tpu.memory_space<vmem>>, vector<256x32xbf16>
    %cst_9 = arith.constant dense<0.000000e+00> : vector<32x32xf32>
    %14 = tpu.matmul %12, %13, %cst_9 {dimension_numbers = #tpu.dot_dimension_numbers<[1], [0], [0], [1], [0, 0, 1, 1], [], []>} : vector<32x256xbf16>, vector<256x32xbf16>, vector<32x32xf32> -> vector<32x32xf32>
    %c0_10 = arith.constant 0 : index
    %c0_11 = arith.constant 0 : index
    %15 = vector.load %arg5[%c0_10, %c0_11] : memref<1x32xf32, #tpu.memory_space<vmem>>, vector<1x32xf32>
    %16 = vector.broadcast %15 : vector<1x32xf32> to vector<32x32xf32>
    %17 = arith.addf %14, %16 : vector<32x32xf32>
    %cst_12 = arith.constant 0.000000e+00 : f32
    %18 = vector.broadcast %cst_12 : f32 to vector<32x32xf32>
    %19 = arith.cmpf ogt, %17, %18 : vector<32x32xf32>
    %cst_13 = arith.constant 0.00999999977 : f32
    %20 = vector.broadcast %cst_13 : f32 to vector<32x32xf32>
    %21 = arith.mulf %20, %17 : vector<32x32xf32>
    %22 = arith.select %19, %17, %21 : vector<32x32xi1>, vector<32x32xf32>
    %c0_14 = arith.constant 0 : index
    %c0_15 = arith.constant 0 : index
    %23 = vector.load %arg6[%c0_14, %c0_15] : memref<32x32xf32, #tpu.memory_space<vmem>>, vector<32x32xf32>
    tpu.vector_store %arg6[%c0_14, %c0_15], %22 {strides = array<i32>} : memref<32x32xf32, #tpu.memory_space<vmem>>, vector<32x32xf32>,
    return
  }
  func.func @transform_0(%arg0: i32) -> (i32, i32) {
    %c0_i32 = arith.constant 0 : i32
    %c0_i32_0 = arith.constant 0 : i32
    return %arg0, %c0_i32 : i32, i32
  }
  func.func @transform_1(%arg0: i32) -> (i32, i32) {
    %c0_i32 = arith.constant 0 : i32
    %c0_i32_0 = arith.constant 0 : i32
    %c0_i32_1 = arith.constant 0 : i32
    return %c0_i32, %c0_i32_0 : i32, i32
  }
  func.func @transform_2(%arg0: i32) -> (i32, i32) {
    %c0_i32 = arith.constant 0 : i32
    %c0_i32_0 = arith.constant 0 : i32
    %c0_i32_1 = arith.constant 0 : i32
    return %c0_i32, %c0_i32_0 : i32, i32
  }
  func.func @transform_3(%arg0: i32) -> (i32, i32) {
    %c0_i32 = arith.constant 0 : i32
    %c0_i32_0 = arith.constant 0 : i32
    %c0_i32_1 = arith.constant 0 : i32
    return %c0_i32, %c0_i32_0 : i32, i32
  }
  func.func @transform_4(%arg0: i32) -> (i32, i32) {
    %c0_i32 = arith.constant 0 : i32
    %c0_i32_0 = arith.constant 0 : i32
    %c0_i32_1 = arith.constant 0 : i32
    return %c0_i32, %c0_i32_0 : i32, i32
  }
  func.func @transform_5(%arg0: i32) -> (i32, i32) {
    %c0_i32 = arith.constant 0 : i32
    %c0_i32_0 = arith.constant 0 : i32
    return %arg0, %c0_i32 : i32, i32
  }
}

</mosaic_0001>

<llo_original>
// kernel: tpu_custom_call.1
$region0: #{tpu_custom_call.1}
  #allocation0 [shape = 'u32[]', space=smem, size = 0x4, offset = 0x4, fixed_abs, tag = 'smem constant byte address 0x4 - core index']
  #allocation1 [shape = 'u32[144,128]{1,0:T(1,128)}', space=vmem, size = 0x12000, scoped, tag = 'internal scratch']
  %s0 = inlined_call_operand.hbm [shape: f32[32,784], index: 0, kind: input, shape index: {}]
  %s1 = inlined_call_operand.hbm [shape: bf16[784,256], index: 1, kind: input, shape index: {}]
  %s2 = inlined_call_operand.vmem [shape: f32[1,256], index: 2, kind: input, shape index: {}]
  %s3 = inlined_call_operand.vmem [shape: bf16[256,32], index: 3, kind: input, shape index: {}]
  %s4 = inlined_call_operand.vmem [shape: f32[1,32], index: 4, kind: input, shape index: {}]
  %s5 = inlined_call_operand.hbm [shape: f32[32,32], index: 5, kind: output, shape index: {}]
  %s6 = sld [smem:[#allocation0]]
  $region38: #{tpu_custom_call.1} parent=0
    _
  %s8 = ssub.s32 1, %s6
  %s9 = scalar_select 0, %s8, %s6
  $region1: #{tpu_custom_call.1} parent=0
    #allocation2 [shape = 'u8[114688]{0}', space=vmem, size = 0x1c000, scoped, tag = 'input window, operand 0, single buffered']
    #allocation3 [shape = 's32[1]{0}', space=sflag, size = 0x4, scoped, tag = 'scoped memory for tpu_custom_call.1']
    #allocation4 [shape = 's32[1]{0}', space=sflag, size = 0x4, scoped, tag = 'scoped memory for tpu_custom_call.1']
    #allocation5 [shape = 'u8[401408]{0}', space=vmem, size = 0x62000, scoped, tag = 'input window, operand 1, single buffered']
    #allocation6 [shape = 's32[1]{0}', space=sflag, size = 0x4, scoped, tag = 'scoped memory for tpu_custom_call.1']
    #allocation7 [shape = 'u8[16384]{0}', space=vmem, size = 0x4000, scoped, tag = 'output window, operand 0, single buffered']
    %10 = vsyncpa [#allocation3], 0
    %11 = vsyncpa [#allocation6], 0
    %12 = vsyncpa [#allocation4], 0
    // Predicated region
    $region2: #{tpu_custom_call.1} parent=1 // pred_check
      _
    $region3: #{tpu_custom_call.1} parent=1 // pred_check_branch
      %14 = sbr.rel (0) target = $region5
    $region4: #{tpu_custom_call.1} parent=1 // pred_region
      %s16 = ssub.s32 3584, 3584
      %17 = vsyncadd [#allocation3], %s16
      %s18 = sshll.u32 [#allocation2], 4
      %s19 = int_to_ptr.vmem [resolvable:$true] %s18
      %24 = dma.hbm_to_vmem [thread:$0]  %s0, 3584, %s19, [#allocation3], 896, 896, 56
    $region5: #{tpu_custom_call.1} parent=1 // pred_fallthru
      _
    // Predicated region
    $region6: #{tpu_custom_call.1} parent=1 // pred_check
      _
    $region7: #{tpu_custom_call.1} parent=1 // pred_check_branch
      %26 = sbr.rel (0) target = $region9
    $region8: #{tpu_custom_call.1} parent=1 // pred_region
      %s28 = ssub.s32 12544, 12544
      %29 = vsyncadd [#allocation6], %s28
      %s30 = sshll.u32 [#allocation5], 4
      %s31 = int_to_ptr.vmem [resolvable:$true] %s30
      %36 = dma.hbm_to_vmem [thread:$0]  %s1, 12544, %s31, [#allocation6], 128, 128, 8
    $region9: #{tpu_custom_call.1} parent=1 // pred_fallthru
      _
    // Predicated region
    $region10: #{tpu_custom_call.1} parent=1 // pred_check
      _
    $region11: #{tpu_custom_call.1} parent=1 // pred_check_branch
      %38 = sbr.rel (0) target = $region13
    $region12: #{tpu_custom_call.1} parent=1 // pred_region
      _
    $region13: #{tpu_custom_call.1} parent=1 // pred_fallthru
      _
    // Predicated region
    $region14: #{tpu_custom_call.1} parent=1 // pred_check
      _
    $region15: #{tpu_custom_call.1} parent=1 // pred_check_branch
      %40 = sbr.rel (0) target = $region17
    $region16: #{tpu_custom_call.1} parent=1 // pred_region
      _
    $region17: #{tpu_custom_call.1} parent=1 // pred_fallthru
      _
    // Predicated region
    $region18: #{tpu_custom_call.1} parent=1 // pred_check
      _
    $region19: #{tpu_custom_call.1} parent=1 // pred_check_branch
      %42 = sbr.rel (0) target = $region21
    $region20: #{tpu_custom_call.1} parent=1 // pred_region
      _
    $region21: #{tpu_custom_call.1} parent=1 // pred_fallthru
      _
    // Predicated region
    $region22: #{tpu_custom_call.1} parent=1 // pred_check
      _
    $region23: #{tpu_custom_call.1} parent=1 // pred_check_branch
      %44 = sbr.rel (0) target = $region25
    $region24: #{tpu_custom_call.1} parent=1 // pred_region
      %45 = dma.done [#allocation3], 3584
    $region25: #{tpu_custom_call.1} parent=1 // pred_fallthru
      _
    // Predicated region
    $region26: #{tpu_custom_call.1} parent=1 // pred_check
      _
    $region27: #{tpu_custom_call.1} parent=1 // pred_check_branch
      %47 = sbr.rel (0) target = $region29
    $region28: #{tpu_custom_call.1} parent=1 // pred_region
      %48 = dma.done [#allocation6], 12544
    $region29: #{tpu_custom_call.1} parent=1 // pred_fallthru
      _
    %v50 = vld [vmem:[#allocation2] sm:$0xff]
    %v51 = vld [vmem:[#allocation2 + $0x8] sm:$0xff]
    %v52 = vld [vmem:[#allocation2 + $0x10] sm:$0xff]
    %v53 = vld [vmem:[#allocation2 + $0x18] sm:$0xff]
    %v54 = vld [vmem:[#allocation2 + $0x20] sm:$0xff]
    %v55 = vld [vmem:[#allocation2 + $0x28] sm:$0xff]
    %v56 = vld [vmem:[#allocation2 + $0x30] sm:$0xff]
    %v57 = vld [vmem:[#allocation2 + $0x38] sm:$0xff]
    %v58 = vld [vmem:[#allocation2 + $0x40] sm:$0xff]
    %v59 = vld [vmem:[#allocation2 + $0x48] sm:$0xff]
    %v60 = vld [vmem:[#allocation2 + $0x50] sm:$0xff]
    %v61 = vld [vmem:[#allocation2 + $0x58] sm:$0xff]
    %v62 = vld [vmem:[#allocation2 + $0x60] sm:$0xff]
    %v63 = vld [vmem:[#allocation2 + $0x68] sm:$0xff]
    %v64 = vld [vmem:[#allocation2 + $0x70] sm:$0xff]
    %v65 = vld [vmem:[#allocation2 + $0x78] sm:$0xff]
    %v66 = vld [vmem:[#allocation2 + $0x80] sm:$0xff]
    %v67 = vld [vmem:[#allocation2 + $0x88] sm:$0xff]
    %v68 = vld [vmem:[#allocation2 + $0x90] sm:$0xff]
    %v69 = vld [vmem:[#allocation2 + $0x98] sm:$0xff]
    %v70 = vld [vmem:[#allocation2 + $0xa0] sm:$0xff]
    %v71 = vld [vmem:[#allocation2 + $0xa8] sm:$0xff]
    %v72 = vld [vmem:[#allocation2 + $0xb0] sm:$0xff]
    %v73 = vld [vmem:[#allocation2 + $0xb8] sm:$0xff]
    %v74 = vld [vmem:[#allocation2 + $0xc0] sm:$0xff]
    %v75 = vld [vmem:[#allocation2 + $0xc8] sm:$0xff]
    %v76 = vld [vmem:[#allocation2 + $0xd0] sm:$0xff]
    %v77 = vld [vmem:[#allocation2 + $0xd8] sm:$0xff]
    %v78 = vpack.c.bf16 %v57, %v50
    %v79 = vpack.c.bf16 %v58, %v51
    %v80 = vpack.c.bf16 %v59, %v52
    %v81 = vpack.c.bf16 %v60, %v53
    %v82 = vpack.c.bf16 %v61, %v54
    %v83 = vpack.c.bf16 %v62, %v55
    %v84 = vpack.c.bf16 %v63, %v56
    %v85 = vpack.c.bf16 %v71, %v64
    %v86 = vpack.c.bf16 %v72, %v65
    %v87 = vpack.c.bf16 %v73, %v66
    %v88 = vpack.c.bf16 %v74, %v67
    %v89 = vpack.c.bf16 %v75, %v68
    %v90 = vpack.c.bf16 %v76, %v69
    %v91 = vpack.c.bf16 %v77, %v70
    %v92 = vld [vmem:[#allocation5] sm:$0xff]
    %v93 = vld [vmem:[#allocation5 + $0x8] sm:$0xff]
    %v94 = vld [vmem:[#allocation5 + $0x10] sm:$0xff]
    %v95 = vld [vmem:[#allocation5 + $0x18] sm:$0xff]
    %v96 = vld [vmem:[#allocation5 + $0x20] sm:$0xff]
    %v97 = vld [vmem:[#allocation5 + $0x28] sm:$0xff]
    %v98 = vld [vmem:[#allocation5 + $0x30] sm:$0xff]
    %v99 = vld [vmem:[#allocation5 + $0x38] sm:$0xff]
    %v100 = vld [vmem:[#allocation5 + $0x40] sm:$0xff]
    %v101 = vld [vmem:[#allocation5 + $0x48] sm:$0xff]
    %v102 = vld [vmem:[#allocation5 + $0x50] sm:$0xff]
    %v103 = vld [vmem:[#allocation5 + $0x58] sm:$0xff]
    %v104 = vld [vmem:[#allocation5 + $0x60] sm:$0xff]
    %v105 = vld [vmem:[#allocation5 + $0x68] sm:$0xff]
    %v106 = vld [vmem:[#allocation5 + $0x70] sm:$0xff]
    %v107 = vld [vmem:[#allocation5 + $0x78] sm:$0xff]
    %v108 = vld [vmem:[#allocation5 + $0x80] sm:$0xff]
    %v109 = vld [vmem:[#allocation5 + $0x88] sm:$0xff]
    %v110 = vld [vmem:[#allocation5 + $0x90] sm:$0xff]
    %v111 = vld [vmem:[#allocation5 + $0x98] sm:$0xff]
    %v112 = vld [vmem:[#allocation5 + $0xa0] sm:$0xff]
    %v113 = vld [vmem:[#allocation5 + $0xa8] sm:$0xff]
    %v114 = vld [vmem:[#allocation5 + $0xb0] sm:$0xff]
    %v115 = vld [vmem:[#allocation5 + $0xb8] sm:$0xff]
    %v116 = vld [vmem:[#allocation5 + $0xc0] sm:$0xff]
    %v117 = vld [vmem:[#allocation5 + $0xc8] sm:$0xff]
    %v118 = vld [vmem:[#allocation5 + $0xd0] sm:$0xff]
    %v119 = vld [vmem:[#allocation5 + $0xd8] sm:$0xff]
    %v120 = vld [vmem:[#allocation5 + $0xe0] sm:$0xff]
    %v121 = vld [vmem:[#allocation5 + $0xe8] sm:$0xff]
    %v122 = vld [vmem:[#allocation5 + $0xf0] sm:$0xff]
    %v123 = vld [vmem:[#allocation5 + $0xf8] sm:$0xff]
    %v124 = vld [vmem:[#allocation5 + $0x100] sm:$0xff]
    %v125 = vld [vmem:[#allocation5 + $0x108] sm:$0xff]
    %v126 = vld [vmem:[#allocation5 + $0x110] sm:$0xff]
    %v127 = vld [vmem:[#allocation5 + $0x118] sm:$0xff]
    %v128 = vld [vmem:[#allocation5 + $0x120] sm:$0xff]
    %v129 = vld [vmem:[#allocation5 + $0x128] sm:$0xff]
    %v130 = vld [vmem:[#allocation5 + $0x130] sm:$0xff]
    %v131 = vld [vmem:[#allocation5 + $0x138] sm:$0xff]
    %v132 = vld [vmem:[#allocation5 + $0x140] sm:$0xff]
    %v133 = vld [vmem:[#allocation5 + $0x148] sm:$0xff]
    %v134 = vld [vmem:[#allocation5 + $0x150] sm:$0xff]
    %v135 = vld [vmem:[#allocation5 + $0x158] sm:$0xff]
    %v136 = vld [vmem:[#allocation5 + $0x160] sm:$0xff]
    %v137 = vld [vmem:[#allocation5 + $0x168] sm:$0xff]
    %v138 = vld [vmem:[#allocation5 + $0x170] sm:$0xff]
    %v139 = vld [vmem:[#allocation5 + $0x178] sm:$0xff]
    %v140 = vld [vmem:[#allocation5 + $0x180] sm:$0xff]
    %v141 = vld [vmem:[#allocation5 + $0x188] sm:$0xff]
    %v142 = vld [vmem:[#allocation5 + $0x190] sm:$0xff]
    %v143 = vld [vmem:[#allocation5 + $0x198] sm:$0xff]
    %v144 = vld [vmem:[#allocation5 + $0x1a0] sm:$0xff]
    %v145 = vld [vmem:[#allocation5 + $0x1a8] sm:$0xff]
    %v146 = vld [vmem:[#allocation5 + $0x1b0] sm:$0xff]
    %v147 = vld [vmem:[#allocation5 + $0x1b8] sm:$0xff]
    %v148 = vld [vmem:[#allocation5 + $0x1c0] sm:$0xff]
    %v149 = vld [vmem:[#allocation5 + $0x1c8] sm:$0xff]
    %v150 = vld [vmem:[#allocation5 + $0x1d0] sm:$0xff]
    %v151 = vld [vmem:[#allocation5 + $0x1d8] sm:$0xff]
    %v152 = vld [vmem:[#allocation5 + $0x1e0] sm:$0xff]
    %v153 = vld [vmem:[#allocation5 + $0x1e8] sm:$0xff]
    %v154 = vld [vmem:[#allocation5 + $0x1f0] sm:$0xff]
    %v155 = vld [vmem:[#allocation5 + $0x1f8] sm:$0xff]
    %v156 = vld [vmem:[#allocation5 + $0x200] sm:$0xff]
    %v157 = vld [vmem:[#allocation5 + $0x208] sm:$0xff]
    %v158 = vld [vmem:[#allocation5 + $0x210] sm:$0xff]
    %v159 = vld [vmem:[#allocation5 + $0x218] sm:$0xff]
    %v160 = vld [vmem:[#allocation5 + $0x220] sm:$0xff]
    %v161 = vld [vmem:[#allocation5 + $0x228] sm:$0xff]
    %v162 = vld [vmem:[#allocation5 + $0x230] sm:$0xff]
    %v163 = vld [vmem:[#allocation5 + $0x238] sm:$0xff]
    %v164 = vld [vmem:[#allocation5 + $0x240] sm:$0xff]
    %v165 = vld [vmem:[#allocation5 + $0x248] sm:$0xff]
    %v166 = vld [vmem:[#allocation5 + $0x250] sm:$0xff]
    %v167 = vld [vmem:[#allocation5 + $0x258] sm:$0xff]
    %v168 = vld [vmem:[#allocation5 + $0x260] sm:$0xff]
    %v169 = vld [vmem:[#allocation5 + $0x268] sm:$0xff]
    %v170 = vld [vmem:[#allocation5 + $0x270] sm:$0xff]
    %v171 = vld [vmem:[#allocation5 + $0x278] sm:$0xff]
    %v172 = vld [vmem:[#allocation5 + $0x280] sm:$0xff]
    %v173 = vld [vmem:[#allocation5 + $0x288] sm:$0xff]
    %v174 = vld [vmem:[#allocation5 + $0x290] sm:$0xff]
    %v175 = vld [vmem:[#allocation5 + $0x298] sm:$0xff]
    %v176 = vld [vmem:[#allocation5 + $0x2a0] sm:$0xff]
    %v177 = vld [vmem:[#allocation5 + $0x2a8] sm:$0xff]
    %v178 = vld [vmem:[#allocation5 + $0x2b0] sm:$0xff]
    %v179 = vld [vmem:[#allocation5 + $0x2b8] sm:$0xff]
    %v180 = vld [vmem:[#allocation5 + $0x2c0] sm:$0xff]
    %v181 = vld [vmem:[#allocation5 + $0x2c8] sm:$0xff]
    %v182 = vld [vmem:[#allocation5 + $0x2d0] sm:$0xff]
    %v183 = vld [vmem:[#allocation5 + $0x2d8] sm:$0xff]
    %v184 = vld [vmem:[#allocation5 + $0x2e0] sm:$0xff]
    %v185 = vld [vmem:[#allocation5 + $0x2e8] sm:$0xff]
    %v186 = vld [vmem:[#allocation5 + $0x2f0] sm:$0xff]
    %v187 = vld [vmem:[#allocation5 + $0x2f8] sm:$0xff]
    %v188 = vld [vmem:[#allocation5 + $0x300] sm:$0xff]
    %v189 = vld [vmem:[#allocation5 + $0x308] sm:$0xff]
    %v190 = vld [vmem:[%s2] sm:$0x3]
    %v192 = vlaneseq
    %v193 = vshrl.u32 %v192, 7
    %v194 = vsub.s32 0, %v193
    %v195 = vrot.slane %v190, %v194
    %v196 = vlaneseq
    %v197 = vshrl.u32 %v196, 7
    %v198 = vsub.s32 1, %v197
    %v199 = vrot.slane %v190, %v198
    %v300 = vunpack.c.l.b16 %v92
    %v301 = vunpack.c.h.b16 %v92
    %v302 = vunpack.c.l.b16 %v93
    %v303 = vunpack.c.h.b16 %v93
    %v304 = vunpack.c.l.b16 %v94
    %v305 = vunpack.c.h.b16 %v94
    %v306 = vunpack.c.l.b16 %v95
    %v307 = vunpack.c.h.b16 %v95
    %v308 = vunpack.c.l.b16 %v96
    %v309 = vunpack.c.h.b16 %v96
    %v310 = vunpack.c.l.b16 %v97
    %v311 = vunpack.c.h.b16 %v97
    %v312 = vunpack.c.l.b16 %v98
    %v313 = vunpack.c.h.b16 %v98
    %v314 = vunpack.c.l.b16 %v99
    %v315 = vunpack.c.h.b16 %v99
    %v316 = vunpack.c.l.b16 %v100
    %v317 = vunpack.c.h.b16 %v100
    %v318 = vunpack.c.l.b16 %v101
    %v319 = vunpack.c.h.b16 %v101
    %v320 = vunpack.c.l.b16 %v102
    %v321 = vunpack.c.h.b16 %v102
    %v322 = vunpack.c.l.b16 %v103
    %v323 = vunpack.c.h.b16 %v103
    %v324 = vunpack.c.l.b16 %v104
    %v325 = vunpack.c.h.b16 %v104
    %v326 = vunpack.c.l.b16 %v105
    %v327 = vunpack.c.h.b16 %v105
    %v328 = vunpack.c.l.b16 %v106
    %v329 = vunpack.c.h.b16 %v106
    %v330 = vunpack.c.l.b16 %v107
    %v331 = vunpack.c.h.b16 %v107
    %v332 = vunpack.c.l.b16 %v108
    %v333 = vunpack.c.h.b16 %v108
    %v334 = vunpack.c.l.b16 %v109
    %v335 = vunpack.c.h.b16 %v109
    %v336 = vunpack.c.l.b16 %v110
    %v337 = vunpack.c.h.b16 %v110
    %v338 = vunpack.c.l.b16 %v111
    %v339 = vunpack.c.h.b16 %v111
    %v340 = vunpack.c.l.b16 %v112
    %v341 = vunpack.c.h.b16 %v112
    %v342 = vunpack.c.l.b16 %v113
    %v343 = vunpack.c.h.b16 %v113
    %v344 = vunpack.c.l.b16 %v114
    %v345 = vunpack.c.h.b16 %v114
    %v346 = vunpack.c.l.b16 %v115
    %v347 = vunpack.c.h.b16 %v115
    %v348 = vunpack.c.l.b16 %v116
    %v349 = vunpack.c.h.b16 %v116
    %v350 = vunpack.c.l.b16 %v117
    %v351 = vunpack.c.h.b16 %v117
    %v352 = vunpack.c.l.b16 %v118
    %v353 = vunpack.c.h.b16 %v118
    %v354 = vunpack.c.l.b16 %v119
    %v355 = vunpack.c.h.b16 %v119
    %v356 = vunpack.c.l.b16 %v120
    %v357 = vunpack.c.h.b16 %v120
    %v358 = vunpack.c.l.b16 %v121
    %v359 = vunpack.c.h.b16 %v121
    %v360 = vunpack.c.l.b16 %v122
    %v361 = vunpack.c.h.b16 %v122
    %v362 = vunpack.c.l.b16 %v123
    %v363 = vunpack.c.h.b16 %v123
    %v364 = vunpack.c.l.b16 %v124
    %v365 = vunpack.c.h.b16 %v124
    %v366 = vunpack.c.l.b16 %v125
    %v367 = vunpack.c.h.b16 %v125
    %v368 = vunpack.c.l.b16 %v126
    %v369 = vunpack.c.h.b16 %v126
    %v370 = vunpack.c.l.b16 %v127
    %v371 = vunpack.c.h.b16 %v127
    %v372 = vunpack.c.l.b16 %v128
    %v373 = vunpack.c.h.b16 %v128
    %v374 = vunpack.c.l.b16 %v129
    %v375 = vunpack.c.h.b16 %v129
    %v376 = vunpack.c.l.b16 %v130
    %v377 = vunpack.c.h.b16 %v130
    %v378 = vunpack.c.l.b16 %v131
    %v379 = vunpack.c.h.b16 %v131
    %v380 = vunpack.c.l.b16 %v132
    %v381 = vunpack.c.h.b16 %v132
    %v382 = vunpack.c.l.b16 %v133
    %v383 = vunpack.c.h.b16 %v133
    %v384 = vunpack.c.l.b16 %v134
    %v385 = vunpack.c.h.b16 %v134
    %v386 = vunpack.c.l.b16 %v135
    %v387 = vunpack.c.h.b16 %v135
    %v388 = vunpack.c.l.b16 %v136
    %v389 = vunpack.c.h.b16 %v136
    %v390 = vunpack.c.l.b16 %v137
    %v391 = vunpack.c.h.b16 %v137
    %v392 = vunpack.c.l.b16 %v138
    %v393 = vunpack.c.h.b16 %v138
    %v394 = vunpack.c.l.b16 %v139
    %v395 = vunpack.c.h.b16 %v139
    %v396 = vunpack.c.l.b16 %v140
    %v397 = vunpack.c.h.b16 %v140
    %v398 = vunpack.c.l.b16 %v141
    %v399 = vunpack.c.h.b16 %v141
    %v400 = vunpack.c.l.b16 %v142
    %v401 = vunpack.c.h.b16 %v142
    %v402 = vunpack.c.l.b16 %v143
    %v403 = vunpack.c.h.b16 %v143
    %v404 = vunpack.c.l.b16 %v144
    %v405 = vunpack.c.h.b16 %v144
    %v406 = vunpack.c.l.b16 %v145
    %v407 = vunpack.c.h.b16 %v145
    %v408 = vunpack.c.l.b16 %v146
    %v409 = vunpack.c.h.b16 %v146
    %v410 = vunpack.c.l.b16 %v147
    %v411 = vunpack.c.h.b16 %v147
    %v412 = vunpack.c.l.b16 %v148
    %v413 = vunpack.c.h.b16 %v148
    %v414 = vunpack.c.l.b16 %v149
    %v415 = vunpack.c.h.b16 %v149
    %v416 = vunpack.c.l.b16 %v150
    %v417 = vunpack.c.h.b16 %v150
    %v418 = vunpack.c.l.b16 %v151
    %v419 = vunpack.c.h.b16 %v151
    %v420 = vunpack.c.l.b16 %v152
    %v421 = vunpack.c.h.b16 %v152
    %v422 = vunpack.c.l.b16 %v153
    %v423 = vunpack.c.h.b16 %v153
    %v424 = vunpack.c.l.b16 %v154
    %v425 = vunpack.c.h.b16 %v154
    %v426 = vunpack.c.l.b16 %v155
    %v427 = vunpack.c.h.b16 %v155
    %v428 = vunpack.c.l.b16 %v156
    %v429 = vunpack.c.h.b16 %v156
    %v430 = vunpack.c.l.b16 %v157
    %v431 = vunpack.c.h.b16 %v157
    %v432 = vunpack.c.l.b16 %v158
    %v433 = vunpack.c.h.b16 %v158
    %v434 = vunpack.c.l.b16 %v159
    %v435 = vunpack.c.h.b16 %v159
    %v436 = vunpack.c.l.b16 %v160
    %v437 = vunpack.c.h.b16 %v160
    %v438 = vunpack.c.l.b16 %v161
    %v439 = vunpack.c.h.b16 %v161
    %v440 = vunpack.c.l.b16 %v162
    %v441 = vunpack.c.h.b16 %v162
    %v442 = vunpack.c.l.b16 %v163
    %v443 = vunpack.c.h.b16 %v163
    %v444 = vunpack.c.l.b16 %v164
    %v445 = vunpack.c.h.b16 %v164
    %v446 = vunpack.c.l.b16 %v165
    %v447 = vunpack.c.h.b16 %v165
    %v448 = vunpack.c.l.b16 %v166
    %v449 = vunpack.c.h.b16 %v166
    %v450 = vunpack.c.l.b16 %v167
    %v451 = vunpack.c.h.b16 %v167
    %v452 = vunpack.c.l.b16 %v168
    %v453 = vunpack.c.h.b16 %v168
    %v454 = vunpack.c.l.b16 %v169
    %v455 = vunpack.c.h.b16 %v169
    %v456 = vunpack.c.l.b16 %v170
    %v457 = vunpack.c.h.b16 %v170
    %v458 = vunpack.c.l.b16 %v171
    %v459 = vunpack.c.h.b16 %v171
    %v460 = vunpack.c.l.b16 %v172
    %v461 = vunpack.c.h.b16 %v172
    %v462 = vunpack.c.l.b16 %v173
    %v463 = vunpack.c.h.b16 %v173
    %v464 = vunpack.c.l.b16 %v174
    %v465 = vunpack.c.h.b16 %v174
    %v466 = vunpack.c.l.b16 %v175
    %v467 = vunpack.c.h.b16 %v175
    %v468 = vunpack.c.l.b16 %v176
    %v469 = vunpack.c.h.b16 %v176
    %v470 = vunpack.c.l.b16 %v177
    %v471 = vunpack.c.h.b16 %v177
    %v472 = vunpack.c.l.b16 %v178
    %v473 = vunpack.c.h.b16 %v178
    %v474 = vunpack.c.l.b16 %v179
    %v475 = vunpack.c.h.b16 %v179
    %v476 = vunpack.c.l.b16 %v180
    %v477 = vunpack.c.h.b16 %v180
    %v478 = vunpack.c.l.b16 %v181
    %v479 = vunpack.c.h.b16 %v181
    %v480 = vunpack.c.l.b16 %v182
    %v481 = vunpack.c.h.b16 %v182
    %v482 = vunpack.c.l.b16 %v183
    %v483 = vunpack.c.h.b16 %v183
    %v484 = vunpack.c.l.b16 %v184
    %v485 = vunpack.c.h.b16 %v184
    %v486 = vunpack.c.l.b16 %v185
    %v487 = vunpack.c.h.b16 %v185
    %v488 = vunpack.c.l.b16 %v186
    %v489 = vunpack.c.h.b16 %v186
    %v490 = vunpack.c.l.b16 %v187
    %v491 = vunpack.c.h.b16 %v187
    %v492 = vunpack.c.l.b16 %v188
    %v493 = vunpack.c.h.b16 %v188
    %v494 = vunpack.c.l.b16 %v189
    %v495 = vunpack.c.h.b16 %v189
    %v496 = vpack.c.b16 %v302, %v300
    %v497 = vpack.c.b16 %v303, %v301
    %v498 = vpack.c.b16 %v306, %v304
    %v499 = vpack.c.b16 %v307, %v305
    %v500 = vpack.c.b16 %v310, %v308
    %v501 = vpack.c.b16 %v311, %v309
    %v502 = vpack.c.b16 %v314, %v312
    %v503 = vpack.c.b16 %v315, %v313
    %v504 = vpack.c.b16 %v318, %v316
    %v505 = vpack.c.b16 %v319, %v317
    %v506 = vpack.c.b16 %v322, %v320
    %v507 = vpack.c.b16 %v323, %v321
    %v508 = vpack.c.b16 %v326, %v324
    %v509 = vpack.c.b16 %v327, %v325
    %v510 = vpack.c.b16 %v330, %v328
    %v511 = vpack.c.b16 %v331, %v329
    %v512 = vpack.c.b16 %v334, %v332
    %v513 = vpack.c.b16 %v335, %v333
    %v514 = vpack.c.b16 %v338, %v336
    %v515 = vpack.c.b16 %v339, %v337
    %v516 = vpack.c.b16 %v342, %v340
    %v517 = vpack.c.b16 %v343, %v341
    %v518 = vpack.c.b16 %v346, %v344
    %v519 = vpack.c.b16 %v347, %v345
    %v520 = vpack.c.b16 %v350, %v348
    %v521 = vpack.c.b16 %v351, %v349
    %v522 = vpack.c.b16 %v354, %v352
    %v523 = vpack.c.b16 %v355, %v353
    %v524 = vpack.c.b16 %v358, %v356
    %v525 = vpack.c.b16 %v359, %v357
    %v526 = vpack.c.b16 %v362, %v360
    %v527 = vpack.c.b16 %v363, %v361
    %v528 = vpack.c.b16 %v366, %v364
    %v529 = vpack.c.b16 %v367, %v365
    %v530 = vpack.c.b16 %v370, %v368
    %v531 = vpack.c.b16 %v371, %v369
    %v532 = vpack.c.b16 %v374, %v372
    %v533 = vpack.c.b16 %v375, %v373
    %v534 = vpack.c.b16 %v378, %v376
    %v535 = vpack.c.b16 %v379, %v377
    %v536 = vpack.c.b16 %v382, %v380
    %v537 = vpack.c.b16 %v383, %v381
    %v538 = vpack.c.b16 %v386, %v384
    %v539 = vpack.c.b16 %v387, %v385
    %v540 = vpack.c.b16 %v390, %v388
    %v541 = vpack.c.b16 %v391, %v389
    %v542 = vpack.c.b16 %v394, %v392
    %v543 = vpack.c.b16 %v395, %v393
    %v544 = vpack.c.b16 %v398, %v396
    %v545 = vpack.c.b16 %v399, %v397
    %v546 = vpack.c.b16 %v402, %v400
    %v547 = vpack.c.b16 %v403, %v401
    %v548 = vpack.c.b16 %v406, %v404
    %v549 = vpack.c.b16 %v407, %v405
    %v550 = vpack.c.b16 %v410, %v408
    %v551 = vpack.c.b16 %v411, %v409
    %v552 = vpack.c.b16 %v414, %v412
    %v553 = vpack.c.b16 %v415, %v413
    %v554 = vpack.c.b16 %v418, %v416
    %v555 = vpack.c.b16 %v419, %v417
    %v556 = vpack.c.b16 %v422, %v420
    %v557 = vpack.c.b16 %v423, %v421
    %v558 = vpack.c.b16 %v426, %v424
    %v559 = vpack.c.b16 %v427, %v425
    %v560 = vpack.c.b16 %v430, %v428
    %v561 = vpack.c.b16 %v431, %v429
    %v562 = vpack.c.b16 %v434, %v432
    %v563 = vpack.c.b16 %v435, %v433
    %v564 = vpack.c.b16 %v438, %v436
    %v565 = vpack.c.b16 %v439, %v437
    %v566 = vpack.c.b16 %v442, %v440
    %v567 = vpack.c.b16 %v443, %v441
    %v568 = vpack.c.b16 %v446, %v444
    %v569 = vpack.c.b16 %v447, %v445
    %v570 = vpack.c.b16 %v450, %v448
    %v571 = vpack.c.b16 %v451, %v449
    %v572 = vpack.c.b16 %v454, %v452
    %v573 = vpack.c.b16 %v455, %v453
    %v574 = vpack.c.b16 %v458, %v456
    %v575 = vpack.c.b16 %v459, %v457
    %v576 = vpack.c.b16 %v462, %v460
    %v577 = vpack.c.b16 %v463, %v461
    %v578 = vpack.c.b16 %v466, %v464
    %v579 = vpack.c.b16 %v467, %v465
    %v580 = vpack.c.b16 %v470, %v468
    %v581 = vpack.c.b16 %v471, %v469
    %v582 = vpack.c.b16 %v474, %v472
    %v583 = vpack.c.b16 %v475, %v473
    %v584 = vpack.c.b16 %v478, %v476
    %v585 = vpack.c.b16 %v479, %v477
    %v586 = vpack.c.b16 %v482, %v480
    %v587 = vpack.c.b16 %v483, %v481
    %v588 = vpack.c.b16 %v486, %v484
    %v589 = vpack.c.b16 %v487, %v485
    %v590 = vpack.c.b16 %v490, %v488
    %v591 = vpack.c.b16 %v491, %v489
    %v592 = vpack.c.b16 %v494, %v492
    %v593 = vpack.c.b16 %v495, %v493
    %vm692 = vcmask 130048
    %v694 = vsel %vm692, %v84, 0
    %v697 = vsel %vm692, %v91, 0
    %699 = vmatprep.subr.bf16.mxu0 %v497
    %700 = vmatpush1.bf16.msra.mxu0 %v496
    %701 = vmatprep.subr.bf16.mxu0 %v499
    %702 = vmatpush1.bf16.msra.mxu0 %v498
    %703 = vmatprep.subr.bf16.mxu0 %v501
    %704 = vmatpush1.bf16.msra.mxu0 %v500
    %705 = vmatprep.subr.bf16.mxu0 %v503
    %706 = vmatpush1.bf16.msra.mxu0 %v502
    %707 = vmatprep.subr.bf16.mxu0 %v505
    %708 = vmatpush1.bf16.msra.mxu0 %v504
    %709 = vmatprep.subr.bf16.mxu0 %v507
    %710 = vmatpush1.bf16.msra.mxu0 %v506
    %711 = vmatprep.subr.bf16.mxu0 %v509
    %712 = vmatpush1.bf16.msra.mxu0 %v508
    %713 = vmatprep.subr.bf16.mxu0 %v511
    %714 = vmatpush1.bf16.msra.mxu0 %v510
    %715 = vmatprep.subr.bf16.mxu0 %v513
    %716 = vmatpush1.bf16.msra.mxu0 %v512
    %717 = vmatprep.subr.bf16.mxu0 %v515
    %718 = vmatpush1.bf16.msra.mxu0 %v514
    %719 = vmatprep.subr.bf16.mxu0 %v517
    %720 = vmatpush1.bf16.msra.mxu0 %v516
    %721 = vmatprep.subr.bf16.mxu0 %v519
    %722 = vmatpush1.bf16.msra.mxu0 %v518
    %723 = vmatprep.subr.bf16.mxu0 %v521
    %724 = vmatpush1.bf16.msra.mxu0 %v520
    %725 = vmatprep.subr.bf16.mxu0 %v523
    %726 = vmatpush1.bf16.msra.mxu0 %v522
    %727 = vmatprep.subr.bf16.mxu0 %v525
    %728 = vmatpush1.bf16.msra.mxu0 %v524
    %729 = vmatprep.subr.bf16.mxu0 %v527
    %730 = vmatpush1.bf16.msra.mxu0 %v526
    %731 = vmatprep.mubr.bf16.mxu0 %v79
    %732 = vmatmul.mubr.bf16.gmra.mrb[0].mxu0 %v78
    %v733 = vpop.f32.mrb[0].mxu0
    %v734 = vadd.f32 %v195, %v733
    %v735 = vpop.f32.mrb[0].mxu0
    %v736 = vadd.f32 %v199, %v735
    %v737 = vpop.f32.mrb[0].mxu0
    %v738 = vadd.f32 %v195, %v737
    %v739 = vpop.f32.mrb[0].mxu0
    %v740 = vadd.f32 %v199, %v739
    %741 = vmatprep.mubr.bf16.mxu0 %v86
    %742 = vmatmul.mubr.bf16.gmra.mrb[0].mxu0 %v85
    %v743 = vpop.f32.mrb[0].mxu0
    %v744 = vadd.f32 %v195, %v743
    %v745 = vpop.f32.mrb[0].mxu0
    %v746 = vadd.f32 %v199, %v745
    %v747 = vpop.f32.mrb[0].mxu0
    %v748 = vadd.f32 %v195, %v747
    %v749 = vpop.f32.mrb[0].mxu0
    %v750 = vadd.f32 %v199, %v749
    %751 = vdwg.mxu0
    %752 = vmatprep.subr.bf16.mxu0 %v529
    %753 = vmatpush1.bf16.msra.mxu0 %v528
    %754 = vmatprep.subr.bf16.mxu0 %v531
    %755 = vmatpush1.bf16.msra.mxu0 %v530
    %756 = vmatprep.subr.bf16.mxu0 %v533
    %757 = vmatpush1.bf16.msra.mxu0 %v532
    %758 = vmatprep.subr.bf16.mxu0 %v535
    %759 = vmatpush1.bf16.msra.mxu0 %v534
    %760 = vmatprep.subr.bf16.mxu0 %v537
    %761 = vmatpush1.bf16.msra.mxu0 %v536
    %762 = vmatprep.subr.bf16.mxu0 %v539
    %763 = vmatpush1.bf16.msra.mxu0 %v538
    %764 = vmatprep.subr.bf16.mxu0 %v541
    %765 = vmatpush1.bf16.msra.mxu0 %v540
    %766 = vmatprep.subr.bf16.mxu0 %v543
    %767 = vmatpush1.bf16.msra.mxu0 %v542
    %768 = vmatprep.subr.bf16.mxu0 %v545
    %769 = vmatpush1.bf16.msra.mxu0 %v544
    %770 = vmatprep.subr.bf16.mxu0 %v547
    %771 = vmatpush1.bf16.msra.mxu0 %v546
    %772 = vmatprep.subr.bf16.mxu0 %v549
    %773 = vmatpush1.bf16.msra.mxu0 %v548
    %774 = vmatprep.subr.bf16.mxu0 %v551
    %775 = vmatpush1.bf16.msra.mxu0 %v550
    %776 = vmatprep.subr.bf16.mxu0 %v553
    %777 = vmatpush1.bf16.msra.mxu0 %v552
    %778 = vmatprep.subr.bf16.mxu0 %v555
    %779 = vmatpush1.bf16.msra.mxu0 %v554
    %780 = vmatprep.subr.bf16.mxu0 %v557
    %781 = vmatpush1.bf16.msra.mxu0 %v556
    %782 = vmatprep.subr.bf16.mxu0 %v559
    %783 = vmatpush1.bf16.msra.mxu0 %v558
    %784 = vmatprep.mubr.bf16.mxu0 %v81
    %785 = vmatmul.mubr.bf16.gmra.mrb[0].mxu0 %v80
    %v786 = vpop.f32.mrb[0].mxu0
    %v787 = vadd.f32 %v734, %v786
    %v788 = vpop.f32.mrb[0].mxu0
    %v789 = vadd.f32 %v736, %v788
    %v790 = vpop.f32.mrb[0].mxu0
    %v791 = vadd.f32 %v738, %v790
    %v792 = vpop.f32.mrb[0].mxu0
    %v793 = vadd.f32 %v740, %v792
    %794 = vmatprep.mubr.bf16.mxu0 %v88
    %795 = vmatmul.mubr.bf16.gmra.mrb[0].mxu0 %v87
    %v796 = vpop.f32.mrb[0].mxu0
    %v797 = vadd.f32 %v744, %v796
    %v798 = vpop.f32.mrb[0].mxu0
    %v799 = vadd.f32 %v746, %v798
    %v800 = vpop.f32.mrb[0].mxu0
    %v801 = vadd.f32 %v748, %v800
    %v802 = vpop.f32.mrb[0].mxu0
    %v803 = vadd.f32 %v750, %v802
    %804 = vdwg.mxu0
    %805 = vmatprep.subr.bf16.mxu0 %v561
    %806 = vmatpush1.bf16.msra.mxu0 %v560
    %807 = vmatprep.subr.bf16.mxu0 %v563
    %808 = vmatpush1.bf16.msra.mxu0 %v562
    %809 = vmatprep.subr.bf16.mxu0 %v565
    %810 = vmatpush1.bf16.msra.mxu0 %v564
    %811 = vmatprep.subr.bf16.mxu0 %v567
    %812 = vmatpush1.bf16.msra.mxu0 %v566
    %813 = vmatprep.subr.bf16.mxu0 %v569
    %814 = vmatpush1.bf16.msra.mxu0 %v568
    %815 = vmatprep.subr.bf16.mxu0 %v571
    %816 = vmatpush1.bf16.msra.mxu0 %v570
    %817 = vmatprep.subr.bf16.mxu0 %v573
    %818 = vmatpush1.bf16.msra.mxu0 %v572
    %819 = vmatprep.subr.bf16.mxu0 %v575
    %820 = vmatpush1.bf16.msra.mxu0 %v574
    %821 = vmatprep.subr.bf16.mxu0 %v577
    %822 = vmatpush1.bf16.msra.mxu0 %v576
    %823 = vmatprep.subr.bf16.mxu0 %v579
    %824 = vmatpush1.bf16.msra.mxu0 %v578
    %825 = vmatprep.subr.bf16.mxu0 %v581
    %826 = vmatpush1.bf16.msra.mxu0 %v580
    %827 = vmatprep.subr.bf16.mxu0 %v583
    %828 = vmatpush1.bf16.msra.mxu0 %v582
    %829 = vmatprep.subr.bf16.mxu0 %v585
    %830 = vmatpush1.bf16.msra.mxu0 %v584
    %831 = vmatprep.subr.bf16.mxu0 %v587
    %832 = vmatpush1.bf16.msra.mxu0 %v586
    %833 = vmatprep.subr.bf16.mxu0 %v589
    %834 = vmatpush1.bf16.msra.mxu0 %v588
    %835 = vmatprep.subr.bf16.mxu0 %v591
    %836 = vmatpush1.bf16.msra.mxu0 %v590
    %837 = vmatprep.mubr.bf16.mxu0 %v83
    %838 = vmatmul.mubr.bf16.gmra.mrb[0].mxu0 %v82
    %v839 = vpop.f32.mrb[0].mxu0
    %v840 = vadd.f32 %v787, %v839
    %v841 = vpop.f32.mrb[0].mxu0
    %v842 = vadd.f32 %v789, %v841
    %v843 = vpop.f32.mrb[0].mxu0
    %v844 = vadd.f32 %v791, %v843
    %v845 = vpop.f32.mrb[0].mxu0
    %v846 = vadd.f32 %v793, %v845
    %847 = vmatprep.mubr.bf16.mxu0 %v90
    %848 = vmatmul.mubr.bf16.gmra.mrb[0].mxu0 %v89
    %v849 = vpop.f32.mrb[0].mxu0
    %v850 = vadd.f32 %v797, %v849
    %v851 = vpop.f32.mrb[0].mxu0
    %v852 = vadd.f32 %v799, %v851
    %v853 = vpop.f32.mrb[0].mxu0
    %v854 = vadd.f32 %v801, %v853
    %v855 = vpop.f32.mrb[0].mxu0
    %v856 = vadd.f32 %v803, %v855
    %857 = vdwg.mxu0
    %858 = vmatprep.subr.bf16.mxu0 %v593
    %859 = vmatpush1.bf16.msra.mxu0 %v592
    %860 = vmatprep.subr.bf16.mxu0 0
    %861 = vmatpush1.bf16.msra.mxu0 0
    %862 = vmatprep.subr.bf16.mxu0 0
    %863 = vmatpush1.bf16.msra.mxu0 0
    %864 = vmatprep.subr.bf16.mxu0 0
    %865 = vmatpush1.bf16.msra.mxu0 0
    %866 = vmatprep.subr.bf16.mxu0 0
    %867 = vmatpush1.bf16.msra.mxu0 0
    %868 = vmatprep.subr.bf16.mxu0 0
    %869 = vmatpush1.bf16.msra.mxu0 0
    %870 = vmatprep.subr.bf16.mxu0 0
    %871 = vmatpush1.bf16.msra.mxu0 0
    %872 = vmatprep.subr.bf16.mxu0 0
    %873 = vmatpush1.bf16.msra.mxu0 0
    %874 = vmatprep.subr.bf16.mxu0 0
    %875 = vmatpush1.bf16.msra.mxu0 0
    %876 = vmatprep.subr.bf16.mxu0 0
    %877 = vmatpush1.bf16.msra.mxu0 0
    %878 = vmatprep.subr.bf16.mxu0 0
    %879 = vmatpush1.bf16.msra.mxu0 0
    %880 = vmatprep.subr.bf16.mxu0 0
    %881 = vmatpush1.bf16.msra.mxu0 0
    %882 = vmatprep.subr.bf16.mxu0 0
    %883 = vmatpush1.bf16.msra.mxu0 0
    %884 = vmatprep.subr.bf16.mxu0 0
    %885 = vmatpush1.bf16.msra.mxu0 0
    %886 = vmatprep.subr.bf16.mxu0 0
    %887 = vmatpush1.bf16.msra.mxu0 0
    %888 = vmatprep.subr.bf16.mxu0 0
    %889 = vmatpush1.bf16.msra.mxu0 0
    %890 = vmatprep.mubr.bf16.mxu0 0
    %891 = vmatmul.mubr.bf16.gmra.mrb[0].mxu0 %v694
    %v892 = vpop.f32.mrb[0].mxu0
    %v893 = vadd.f32 %v840, %v892
    %v894 = vpop.f32.mrb[0].mxu0
    %v895 = vadd.f32 %v842, %v894
    %v896 = vpop.f32.mrb[0].mxu0
    %v897 = vadd.f32 %v844, %v896
    %v898 = vpop.f32.mrb[0].mxu0
    %v899 = vadd.f32 %v846, %v898
    %900 = vmatprep.mubr.bf16.mxu0 0
    %901 = vmatmul.mubr.bf16.gmra.mrb[0].mxu0 %v697
    %v902 = vpop.f32.mrb[0].mxu0
    %v903 = vadd.f32 %v850, %v902
    %v904 = vpop.f32.mrb[0].mxu0
    %v905 = vadd.f32 %v852, %v904
    %v906 = vpop.f32.mrb[0].mxu0
    %v907 = vadd.f32 %v854, %v906
    %v908 = vpop.f32.mrb[0].mxu0
    %v909 = vadd.f32 %v856, %v908
    %910 = vdwg.mxu0
    %vm911 = vcmp.gt.f32.partialorder %v893, 0.0
    %vm912 = vcmp.gt.f32.partialorder %v895, 0.0
    %vm913 = vcmp.gt.f32.partialorder %v897, 0.0
    %vm914 = vcmp.gt.f32.partialorder %v899, 0.0
    %vm915 = vcmp.gt.f32.partialorder %v903, 0.0
    %vm916 = vcmp.gt.f32.partialorder %v905, 0.0
    %vm917 = vcmp.gt.f32.partialorder %v907, 0.0
    %vm918 = vcmp.gt.f32.partialorder %v909, 0.0
    %v919 = vmul.f32 %v893, 0.01
    %v920 = vmul.f32 %v895, 0.01
    %v921 = vmul.f32 %v897, 0.01
    %v922 = vmul.f32 %v899, 0.01
    %v923 = vmul.f32 %v903, 0.01
    %v924 = vmul.f32 %v905, 0.01
    %v925 = vmul.f32 %v907, 0.01
    %v926 = vmul.f32 %v909, 0.01
    %v927 = vsel %vm911, %v893, %v919
    %v928 = vsel %vm912, %v895, %v920
    %v929 = vsel %vm913, %v897, %v921
    %v930 = vsel %vm914, %v899, %v922
    %v931 = vsel %vm915, %v903, %v923
    %v932 = vsel %vm916, %v905, %v924
    %v933 = vsel %vm917, %v907, %v925
    %v934 = vsel %vm918, %v909, %v926
    %v935 = vpack.c.bf16 %v929, %v927
    %v936 = vpack.c.bf16 %v930, %v928
    %v937 = vpack.c.bf16 %v933, %v931
    %v938 = vpack.c.bf16 %v934, %v932
    %v939 = vld [vmem:[%s3] sm:$0xf]
    %v940 = vld [vmem:[%s3 + $0x4] sm:$0xf]
    %v941 = vld [vmem:[%s3 + $0x8] sm:$0xf]
    %v942 = vld [vmem:[%s3 + $0xc] sm:$0xf]
    %v943 = vld [vmem:[%s3 + $0x10] sm:$0xf]
    %v944 = vld [vmem:[%s3 + $0x14] sm:$0xf]
    %v945 = vld [vmem:[%s3 + $0x18] sm:$0xf]
    %v946 = vld [vmem:[%s3 + $0x1c] sm:$0xf]
    %v947 = vld [vmem:[%s3 + $0x20] sm:$0xf]
    %v948 = vld [vmem:[%s3 + $0x24] sm:$0xf]
    %v949 = vld [vmem:[%s3 + $0x28] sm:$0xf]
    %v950 = vld [vmem:[%s3 + $0x2c] sm:$0xf]
    %v951 = vld [vmem:[%s3 + $0x30] sm:$0xf]
    %v952 = vld [vmem:[%s3 + $0x34] sm:$0xf]
    %v953 = vld [vmem:[%s3 + $0x38] sm:$0xf]
    %v954 = vld [vmem:[%s3 + $0x3c] sm:$0xf]
    %v955 = vld [vmem:[%s3 + $0x40] sm:$0xf]
    %v956 = vld [vmem:[%s3 + $0x44] sm:$0xf]
    %v957 = vld [vmem:[%s3 + $0x48] sm:$0xf]
    %v958 = vld [vmem:[%s3 + $0x4c] sm:$0xf]
    %v959 = vld [vmem:[%s3 + $0x50] sm:$0xf]
    %v960 = vld [vmem:[%s3 + $0x54] sm:$0xf]
    %v961 = vld [vmem:[%s3 + $0x58] sm:$0xf]
    %v962 = vld [vmem:[%s3 + $0x5c] sm:$0xf]
    %v963 = vld [vmem:[%s3 + $0x60] sm:$0xf]
    %v964 = vld [vmem:[%s3 + $0x64] sm:$0xf]
    %v965 = vld [vmem:[%s3 + $0x68] sm:$0xf]
    %v966 = vld [vmem:[%s3 + $0x6c] sm:$0xf]
    %v967 = vld [vmem:[%s3 + $0x70] sm:$0xf]
    %v968 = vld [vmem:[%s3 + $0x74] sm:$0xf]
    %v969 = vld [vmem:[%s3 + $0x78] sm:$0xf]
    %v970 = vld [vmem:[%s3 + $0x7c] sm:$0xf]
    %v971 = vld [vmem:[%s4] sm:$0x1]
    %v973 = vlaneseq
    %v974 = vshrl.u32 %v973, 7
    %v975 = vsub.s32 0, %v974
    %v976 = vrot.slane %v971, %v975
    %v1010 = vunpack.c.l.b16 %v939
    %v1011 = vunpack.c.l.b16 %v940
    %v1012 = vunpack.c.l.b16 %v941
    %v1013 = vunpack.c.l.b16 %v942
    %v1014 = vunpack.c.l.b16 %v943
    %v1015 = vunpack.c.l.b16 %v944
    %v1016 = vunpack.c.l.b16 %v945
    %v1017 = vunpack.c.l.b16 %v946
    %v1018 = vunpack.c.l.b16 %v947
    %v1019 = vunpack.c.l.b16 %v948
    %v1020 = vunpack.c.l.b16 %v949
    %v1021 = vunpack.c.l.b16 %v950
    %v1022 = vunpack.c.l.b16 %v951
    %v1023 = vunpack.c.l.b16 %v952
    %v1024 = vunpack.c.l.b16 %v953
    %v1025 = vunpack.c.l.b16 %v954
    %v1026 = vunpack.c.l.b16 %v955
    %v1027 = vunpack.c.l.b16 %v956
    %v1028 = vunpack.c.l.b16 %v957
    %v1029 = vunpack.c.l.b16 %v958
    %v1030 = vunpack.c.l.b16 %v959
    %v1031 = vunpack.c.l.b16 %v960
    %v1032 = vunpack.c.l.b16 %v961
    %v1033 = vunpack.c.l.b16 %v962
    %v1034 = vunpack.c.l.b16 %v963
    %v1035 = vunpack.c.l.b16 %v964
    %v1036 = vunpack.c.l.b16 %v965
    %v1037 = vunpack.c.l.b16 %v966
    %v1038 = vunpack.c.l.b16 %v967
    %v1039 = vunpack.c.l.b16 %v968
    %v1040 = vunpack.c.l.b16 %v969
    %v1041 = vunpack.c.l.b16 %v970
    %v1042 = vpack.c.b16 %v1011, %v1010
    %v1043 = vpack.c.b16 %v1013, %v1012
    %v1044 = vpack.c.b16 %v1015, %v1014
    %v1045 = vpack.c.b16 %v1017, %v1016
    %v1046 = vpack.c.b16 %v1019, %v1018
    %v1047 = vpack.c.b16 %v1021, %v1020
    %v1048 = vpack.c.b16 %v1023, %v1022
    %v1049 = vpack.c.b16 %v1025, %v1024
    %v1050 = vpack.c.b16 %v1027, %v1026
    %v1051 = vpack.c.b16 %v1029, %v1028
    %v1052 = vpack.c.b16 %v1031, %v1030
    %v1053 = vpack.c.b16 %v1033, %v1032
    %v1054 = vpack.c.b16 %v1035, %v1034
    %v1055 = vpack.c.b16 %v1037, %v1036
    %v1056 = vpack.c.b16 %v1039, %v1038
    %v1057 = vpack.c.b16 %v1041, %v1040
    %1074 = vmatprep.subr.bf16.mxu0 0
    %1075 = vmatpush1.bf16.msra.mxu0 %v1042
    %1076 = vmatprep.subr.bf16.mxu0 0
    %1077 = vmatpush1.bf16.msra.mxu0 %v1043
    %1078 = vmatprep.subr.bf16.mxu0 0
    %1079 = vmatpush1.bf16.msra.mxu0 %v1044
    %1080 = vmatprep.subr.bf16.mxu0 0
    %1081 = vmatpush1.bf16.msra.mxu0 %v1045
    %1082 = vmatprep.subr.bf16.mxu0 0
    %1083 = vmatpush1.bf16.msra.mxu0 %v1046
    %1084 = vmatprep.subr.bf16.mxu0 0
    %1085 = vmatpush1.bf16.msra.mxu0 %v1047
    %1086 = vmatprep.subr.bf16.mxu0 0
    %1087 = vmatpush1.bf16.msra.mxu0 %v1048
    %1088 = vmatprep.subr.bf16.mxu0 0
    %1089 = vmatpush1.bf16.msra.mxu0 %v1049
    %1090 = vmatprep.subr.bf16.mxu0 0
    %1091 = vmatpush1.bf16.msra.mxu0 %v1050
    %1092 = vmatprep.subr.bf16.mxu0 0
    %1093 = vmatpush1.bf16.msra.mxu0 %v1051
    %1094 = vmatprep.subr.bf16.mxu0 0
    %1095 = vmatpush1.bf16.msra.mxu0 %v1052
    %1096 = vmatprep.subr.bf16.mxu0 0
    %1097 = vmatpush1.bf16.msra.mxu0 %v1053
    %1098 = vmatprep.subr.bf16.mxu0 0
    %1099 = vmatpush1.bf16.msra.mxu0 %v1054
    %1100 = vmatprep.subr.bf16.mxu0 0
    %1101 = vmatpush1.bf16.msra.mxu0 %v1055
    %1102 = vmatprep.subr.bf16.mxu0 0
    %1103 = vmatpush1.bf16.msra.mxu0 %v1056
    %1104 = vmatprep.subr.bf16.mxu0 0
    %1105 = vmatpush1.bf16.msra.mxu0 %v1057
    %1106 = vmatprep.mubr.bf16.mxu0 %v936
    %1107 = vmatmul.mubr.bf16.gmra.mrb[0].mxu0 %v935
    %v1108 = vpop.f32.mrb[0].mxu0
    %v1109 = vadd.f32 %v976, %v1108
    %v1110 = vpop.f32.mrb[0].mxu0
    %v1111 = vpop.f32.mrb[0].mxu0
    %v1112 = vadd.f32 %v976, %v1111
    %v1113 = vpop.f32.mrb[0].mxu0
    %1114 = vmatprep.mubr.bf16.mxu0 %v938
    %1115 = vmatmul.mubr.bf16.gmra.mrb[0].mxu0 %v937
    %v1116 = vpop.f32.mrb[0].mxu0
    %v1117 = vadd.f32 %v976, %v1116
    %v1118 = vpop.f32.mrb[0].mxu0
    %v1119 = vpop.f32.mrb[0].mxu0
    %v1120 = vadd.f32 %v976, %v1119
    %v1121 = vpop.f32.mrb[0].mxu0
    %1122 = vdwg.mxu0
    %vm1123 = vcmp.gt.f32.partialorder %v1109, 0.0
    %vm1124 = vcmp.gt.f32.partialorder %v1112, 0.0
    %vm1125 = vcmp.gt.f32.partialorder %v1117, 0.0
    %vm1126 = vcmp.gt.f32.partialorder %v1120, 0.0
    %v1127 = vmul.f32 %v1109, 0.01
    %v1128 = vmul.f32 %v1112, 0.01
    %v1129 = vmul.f32 %v1117, 0.01
    %v1130 = vmul.f32 %v1120, 0.01
    %v1131 = vsel %vm1123, %v1109, %v1127
    %v1132 = vsel %vm1124, %v1112, %v1128
    %v1133 = vsel %vm1125, %v1117, %v1129
    %v1134 = vsel %vm1126, %v1120, %v1130
    %vm1135 = vcmask 261120
    %1136 = vst.msk [vmem:[#allocation7] sm:$0xff] %vm1135, %v1131
    %1137 = vst.msk [vmem:[#allocation7 + $0x8] sm:$0xff] %vm1135, %v1132
    %1138 = vst.msk [vmem:[#allocation7 + $0x10] sm:$0xff] %vm1135, %v1133
    %1139 = vst.msk [vmem:[#allocation7 + $0x18] sm:$0xff] %vm1135, %v1134
    // Predicated region
    $region30: #{tpu_custom_call.1} parent=1 // pred_check
      _
    $region31: #{tpu_custom_call.1} parent=1 // pred_check_branch
      %1141 = sbr.rel (0) target = $region33
    $region32: #{tpu_custom_call.1} parent=1 // pred_region
      %s1143 = ssub.s32 512, 512
      %1144 = vsyncadd [#allocation4], %s1143
      %s1145 = sshll.u32 [#allocation7], 4
      %s1146 = int_to_ptr.vmem [resolvable:$true] %s1145
      %1151 = dma.vmem_to_hbm [thread:$0]  %s1146, 512, %s5, [#allocation4], 128, 128, 8
    $region33: #{tpu_custom_call.1} parent=1 // pred_fallthru
      _
    // Predicated region
    $region34: #{tpu_custom_call.1} parent=1 // pred_check
      _
    $region35: #{tpu_custom_call.1} parent=1 // pred_check_branch
      %1153 = sbr.rel (0) target = $region37
    $region36: #{tpu_custom_call.1} parent=1 // pred_region
      %1154 = dma.done [#allocation4], 512
    $region37: #{tpu_custom_call.1} parent=1 // pred_fallthru
      _
    %1155 = vsyncpa [#allocation3], 1
    %1156 = vsyncpa [#allocation6], 1
    %1157 = vsyncpa [#allocation4], 1

</llo_original>
